<compile_context>
chip_gen: v7x
topology: tpu7x:2x2x1
jax: 0.10.0
libtpu: 0.0.40
codegen_flags: <defaults>
</compile_context>

<pallas_src>
import functools

import jax
import jax.numpy as jnp
from jax import lax
from jax.experimental import pallas as pl
from jax.experimental.pallas import tpu as pltpu

LANES = 128
ACC_ROWS_MAX = 64  # up to 8 f32 vregs of accumulator -> 8 independent add chains


def _acc_rows_for(row_tile):
    for d in (64, 32, 16, 8, 4, 2, 1):
        if row_tile % d == 0:
            return d
    return 1


def _pinball_kernel(pred_ref, act_ref, out_ref, acc_ref, *,
                    tau, scale, rows, row_tile, acc_rows):
    i = pl.program_id(0)

    @pl.when(i == 0)
    def _():
        acc_ref[...] = jnp.zeros_like(acc_ref)

    # Native-dtype tiles come from HBM; cast to f32 on the VPU here.
    diff = act_ref[...].astype(jnp.float32) - pred_ref[...].astype(jnp.float32)
    # diff > 0 -> tau*diff ; diff < 0 -> (tau-1)*diff ; diff == 0 -> 0.
    term = diff * jnp.where(diff > 0.0, jnp.float32(tau), jnp.float32(tau - 1.0))

    # Only emitted (statically) when the last block can extend past the array:
    # mask out-of-bounds rows with jnp.where so unspecified/NaN reads in the
    # padded region of the partial block cannot poison the sum.
    if rows % row_tile != 0:
        row_idx = i * row_tile + lax.broadcasted_iota(
            jnp.int32, (row_tile, LANES), 0)
        term = jnp.where(row_idx < rows, term, 0.0)

    # Partial reduction into an (acc_rows, 128) VMEM accumulator: pure VALU
    # adds, no cross-lane (XLU) work per step.  The reshape only splits the
    # sublane-major axis into whole (8,128) groups (for acc_rows >= 8), so it
    # is a free relayout.
    acc_ref[...] += term.reshape(row_tile // acc_rows, acc_rows, LANES).sum(axis=0)

    # Single cross-lane (XLU) reduce + scalar SMEM write at the final step.
    @pl.when(i == pl.num_programs(0) - 1)
    def _():
        out_ref[0, 0] = jnp.sum(acc_ref[...]) * jnp.float32(scale)


def pinball_loss(predictions, actuals, training_tau, output_size, *,
                 row_tile=8192):
    """Pinball loss over arbitrarily shaped arrays; returns a scalar float32."""
    assert predictions.shape == actuals.shape
    assert predictions.dtype == actuals.dtype

    flat_p = predictions.reshape(-1)
    flat_a = actuals.reshape(-1)
    total = flat_p.size

    # Lane-dense (rows, 128) view in the NATIVE dtype.  Pad only if the
    # flattened length is not a multiple of 128 (<=127 zeros; zero padding
    # contributes 0 because diff == 0 there).  Typical lane-aligned tensors
    # skip this branch entirely, so no extra HBM pass is introduced.
    pad = (-total) % LANES
    if pad:
        flat_p = jnp.pad(flat_p, (0, pad))
        flat_a = jnp.pad(flat_a, (0, pad))
    rows = (total + pad) // LANES

    if rows <= row_tile:
        row_tile_eff = rows                         # one block, full dim
    else:
        row_tile_eff = max(8, (row_tile // 8) * 8)  # multiple of 8 for (8,128)
    acc_rows = _acc_rows_for(row_tile_eff)
    steps = pl.cdiv(rows, row_tile_eff)

    p2 = flat_p.reshape(rows, LANES)
    a2 = flat_a.reshape(rows, LANES)

    kernel = functools.partial(
        _pinball_kernel,
        tau=float(training_tau),
        scale=2.0 / float(output_size),
        rows=rows,
        row_tile=row_tile_eff,
        acc_rows=acc_rows,
    )

    itemsize = jnp.dtype(predictions.dtype).itemsize
    out = pl.pallas_call(
        kernel,
        out_shape=jax.ShapeDtypeStruct((1, 1), jnp.float32),
        grid_spec=pltpu.PrefetchScalarGridSpec(
            num_scalar_prefetch=0,
            grid=(steps,),
            in_specs=[
                pl.BlockSpec((row_tile_eff, LANES), lambda i: (i, 0)),
                pl.BlockSpec((row_tile_eff, LANES), lambda i: (i, 0)),
            ],
            out_specs=pl.BlockSpec((1, 1), lambda i: (0, 0),
                                   memory_space=pltpu.SMEM),
            scratch_shapes=[pltpu.VMEM((acc_rows, LANES), jnp.float32)],
        ),
        compiler_params=pltpu.CompilerParams(
            dimension_semantics=("arbitrary",),
            # 2 inputs x 2 pipeline buffers x 4 MiB (f32, 8192x128) = 16 MiB;
            # 40 MiB is safe on v5e (128 MiB phys), v6e (128) and v7x (64).
            vmem_limit_bytes=40 * 1024 * 1024,
        ),
        cost_estimate=pl.CostEstimate(
            flops=3 * total,
            transcendentals=0,
            bytes_accessed=2 * total * itemsize + 4,
        ),
    )(p2, a2)
    return out[0, 0]


def pinball_loss_ref(predictions, actuals, training_tau, output_size):
    diff = actuals.astype(jnp.float32) - predictions.astype(jnp.float32)
    lt = diff * (diff > 0).astype(jnp.float32) * training_tau
    gt = diff * (diff < 0).astype(jnp.float32) * (training_tau - 1.0)
    return jnp.sum(lt + gt) / output_size * 2.0


if __name__ == "__main__":
    key = jax.random.PRNGKey(0)
    k1, k2, k3, k4, k5, k6 = jax.random.split(key, 6)

    training_tau = 0.49  # deterministic constant from __init__ args

    # 1) Small shape consistent with the module (batch, output_size), f32.
    batch, output_size = 16, 8
    predictions = jax.random.normal(k1, (batch, output_size), dtype=jnp.float32)
    actuals = jax.random.normal(k2, (batch, output_size), dtype=jnp.float32)
    out = jax.block_until_ready(
        pinball_loss(predictions, actuals, training_tau, output_size))
    ref = pinball_loss_ref(predictions, actuals, training_tau, output_size)
    assert jnp.allclose(out, ref, rtol=1e-5, atol=1e-5), (out, ref)

    # 2) Ragged shape (exercises the <=127-element lane-alignment pad).
    batch2, output_size2 = 13, 7
    p2 = jax.random.normal(k3, (batch2, output_size2), dtype=jnp.float32)
    a2 = jax.random.normal(k4, (batch2, output_size2), dtype=jnp.float32)
    out2 = jax.block_until_ready(
        pinball_loss(p2, a2, training_tau, output_size2))
    ref2 = pinball_loss_ref(p2, a2, training_tau, output_size2)
    assert jnp.allclose(out2, ref2, rtol=1e-5, atol=1e-5), (out2, ref2)

    # 3) bf16 inputs, multi-step grid with a partial last block (exercises the
    #    native-dtype in-kernel cast and the in-kernel tail mask; small tile
    #    forced so the small test still runs several grid steps).
    batch3, output_size3 = 44, 64   # 2816 elems -> 22 rows, row_tile=8 -> 3 steps
    p3 = jax.random.normal(k5, (batch3, output_size3), dtype=jnp.bfloat16)
    a3 = jax.random.normal(k6, (batch3, output_size3), dtype=jnp.bfloat16)
    out3 = jax.block_until_ready(
        pinball_loss(p3, a3, training_tau, output_size3, row_tile=8))
    ref3 = pinball_loss_ref(p3, a3, training_tau, output_size3)
    assert jnp.allclose(out3, ref3, rtol=1e-4, atol=1e-3), (out3, ref3)

    print("KERNEL_OK")
</pallas_src>

<mosaic_0001>
module attributes {stable_mosaic.version = 11 : i64} {
  func.func @_pinball_kernel(%arg0: i32, %arg1: memref<1x128xf32, #tpu.memory_space<vmem>>, %arg2: memref<1x128xf32, #tpu.memory_space<vmem>>, %arg3: memref<1x1xf32, #tpu.memory_space<smem>>, %arg4: memref<1x128xf32, #tpu.memory_space<vmem>>) attributes {dimension_semantics = [#tpu.dimension_semantics<arbitrary>], iteration_bounds = array<i64: 1>, scalar_prefetch = 0 : i64, scratch_operands = 1 : i64, tpu.core_type = #tpu.core_type<tc>, window_params = [{transform_indices = @transform_0, window_bounds = array<i64: 1, 128>}, {transform_indices = @transform_1, window_bounds = array<i64: 1, 128>}, {transform_indices = @transform_2, window_bounds = array<i64: 1, 1>}]} {
    %c0_i32 = arith.constant 0 : i32
    %0 = arith.cmpi eq, %arg0, %c0_i32 : i32
    %1 = arith.extui %0 : i1 to i32
    %c0_i32_0 = arith.constant 0 : i32
    %2 = arith.cmpi ne, %1, %c0_i32_0 : i32
    scf.if %2 {
      %cst_13 = arith.constant 0.000000e+00 : f32
      %20 = vector.broadcast %cst_13 : f32 to vector<1x128xf32>
      %c0_14 = arith.constant 0 : index
      %c0_15 = arith.constant 0 : index
      %21 = vector.load %arg4[%c0_14, %c0_15] : memref<1x128xf32, #tpu.memory_space<vmem>>, vector<1x128xf32>
      tpu.vector_store %arg4[%c0_14, %c0_15], %20 {strides = array<i32>} : memref<1x128xf32, #tpu.memory_space<vmem>>, vector<1x128xf32>,
    } else {
    }
    %c0 = arith.constant 0 : index
    %c0_1 = arith.constant 0 : index
    %3 = vector.load %arg2[%c0, %c0_1] : memref<1x128xf32, #tpu.memory_space<vmem>>, vector<1x128xf32>
    %c0_2 = arith.constant 0 : index
    %c0_3 = arith.constant 0 : index
    %4 = vector.load %arg1[%c0_2, %c0_3] : memref<1x128xf32, #tpu.memory_space<vmem>>, vector<1x128xf32>
    %5 = arith.subf %3, %4 : vector<1x128xf32>
    %cst = arith.constant 0.000000e+00 : f32
    %6 = vector.broadcast %cst : f32 to vector<1x128xf32>
    %7 = arith.cmpf ogt, %5, %6 : vector<1x128xf32>
    %cst_4 = arith.constant 4.900000e-01 : f32
    %cst_5 = arith.constant -5.100000e-01 : f32
    %8 = vector.broadcast %cst_4 : f32 to vector<1x128xf32>
    %9 = vector.broadcast %cst_5 : f32 to vector<1x128xf32>
    %10 = arith.select %7, %8, %9 : vector<1x128xi1>, vector<1x128xf32>
    %11 = arith.mulf %5, %10 : vector<1x128xf32>
    %c0_6 = arith.constant 0 : index
    %c0_7 = arith.constant 0 : index
    %12 = vector.load %arg4[%c0_6, %c0_7] : memref<1x128xf32, #tpu.memory_space<vmem>>, vector<1x128xf32>
    %13 = vector.shape_cast %11 : vector<1x128xf32> to vector<1x1x128xf32>
    %cst_8 = arith.constant dense<0.000000e+00> : vector<1x128xf32>
    %14 = vector.multi_reduction <add>, %13, %cst_8 [0] : vector<1x1x128xf32> to vector<1x128xf32>
    %15 = arith.addf %12, %14 : vector<1x128xf32>
    %c0_9 = arith.constant 0 : index
    %c0_10 = arith.constant 0 : index
    %16 = vector.load %arg4[%c0_9, %c0_10] : memref<1x128xf32, #tpu.memory_space<vmem>>, vector<1x128xf32>
    tpu.vector_store %arg4[%c0_9, %c0_10], %15 {strides = array<i32>} : memref<1x128xf32, #tpu.memory_space<vmem>>, vector<1x128xf32>,
    %c0_i32_11 = arith.constant 0 : i32
    %17 = arith.cmpi eq, %arg0, %c0_i32_11 : i32
    %18 = arith.extui %17 : i1 to i32
    %c0_i32_12 = arith.constant 0 : i32
    %19 = arith.cmpi ne, %18, %c0_i32_12 : i32
    scf.if %19 {
      %c0_13 = arith.constant 0 : index
      %c0_14 = arith.constant 0 : index
      %20 = vector.load %arg4[%c0_13, %c0_14] : memref<1x128xf32, #tpu.memory_space<vmem>>, vector<1x128xf32>
      %21 = vector.shape_cast %20 : vector<1x128xf32> to vector<1x1x128xf32>
      %cst_15 = arith.constant dense<0.000000e+00> : vector<1xf32>
      %22 = vector.multi_reduction <add>, %21, %cst_15 [1, 2] : vector<1x1x128xf32> to vector<1xf32>
      %23 = vector.shape_cast %22 : vector<1xf32> to vector<1x1x1xf32>
      %24 = vector.extract %23[0, 0, 0] : f32 from vector<1x1x1xf32>
      %cst_16 = arith.constant 2.500000e-01 : f32
      %25 = arith.mulf %24, %cst_16 : f32
      %c0_17 = arith.constant 0 : index
      %c0_18 = arith.constant 0 : index
      %26 = memref.load %arg3[%c0_17, %c0_18] : memref<1x1xf32, #tpu.memory_space<smem>>
      memref.store %25, %arg3[%c0_17, %c0_18] : memref<1x1xf32, #tpu.memory_space<smem>>
    } else {
    }
    return
  }
  func.func @transform_0(%arg0: i32) -> (i32, i32) {
    %c0_i32 = arith.constant 0 : i32
    %c0_i32_0 = arith.constant 0 : i32
    return %arg0, %c0_i32 : i32, i32
  }
  func.func @transform_1(%arg0: i32) -> (i32, i32) {
    %c0_i32 = arith.constant 0 : i32
    %c0_i32_0 = arith.constant 0 : i32
    return %arg0, %c0_i32 : i32, i32
  }
  func.func @transform_2(%arg0: i32) -> (i32, i32) {
    %c0_i32 = arith.constant 0 : i32
    %c0_i32_0 = arith.constant 0 : i32
    %c0_i32_1 = arith.constant 0 : i32
    return %c0_i32, %c0_i32_0 : i32, i32
  }
}

</mosaic_0001>

<llo_original>
// kernel: tpu_custom_call.1
$region0: #{tpu_custom_call.1}
  #allocation0 [shape = 'u32[]', space=smem, size = 0x4, offset = 0x4, fixed_abs, tag = 'smem constant byte address 0x4 - core index']
  #allocation1 [shape = 'u32[144,128]{1,0:T(1,128)}', space=vmem, size = 0x12000, scoped, tag = 'internal scratch']
  #allocation2 [shape = 'f32[1,128]{1,0:T(1,128)}', space=vmem, size = 0x200, scoped, tag = 'scratch operand']
  %s0 = inlined_call_operand.hbm [shape: f32[1,128], index: 0, kind: input, shape index: {}]
  %s1 = inlined_call_operand.vmem [shape: f32[1,128], index: 1, kind: input, shape index: {}]
  %s2 = inlined_call_operand.hbm [shape: f32[1,1], index: 2, kind: output, shape index: {}]
  %s3 = sld [smem:[#allocation0]]
  $region30: #{tpu_custom_call.1} parent=0
    _
  %s5 = ssub.s32 1, %s3
  %s6 = scalar_select 0, %s5, %s3
  $region1: #{tpu_custom_call.1} parent=0
    #allocation3 [shape = 'u8[512]{0}', space=vmem, size = 0x400, scoped, tag = 'input window, operand 0, single buffered']
    #allocation4 [shape = 's32[1]{0}', space=sflag, size = 0x4, scoped, tag = 'scoped memory for tpu_custom_call.1']
    #allocation5 [shape = 's32[1]{0}', space=sflag, size = 0x4, scoped, tag = 'scoped memory for tpu_custom_call.1']
    #allocation6 [shape = 'u8[512]{0}', space=smem, size = 0x200, scoped, tag = 'output window, operand 0, single buffered']
    %7 = vsyncpa [#allocation4], 0
    %8 = vsyncpa [#allocation5], 0
    // Predicated region
    $region2: #{tpu_custom_call.1} parent=1 // pred_check
      _
    $region3: #{tpu_custom_call.1} parent=1 // pred_check_branch
      %10 = sbr.rel (0) target = $region5
    $region4: #{tpu_custom_call.1} parent=1 // pred_region
      %s12 = ssub.s32 16, 16
      %13 = vsyncadd [#allocation4], %s12
      %s15 = sshll.u32 [#allocation3], 4
      %s16 = int_to_ptr.vmem [resolvable:$true] %s15
      %18 = dma.hbm_to_vmem [thread:$0]  %s0, 16, %s16, [#allocation4]
    $region5: #{tpu_custom_call.1} parent=1 // pred_fallthru
      _
    // Predicated region
    $region6: #{tpu_custom_call.1} parent=1 // pred_check
      _
    $region7: #{tpu_custom_call.1} parent=1 // pred_check_branch
      %20 = sbr.rel (0) target = $region9
    $region8: #{tpu_custom_call.1} parent=1 // pred_region
      _
    $region9: #{tpu_custom_call.1} parent=1 // pred_fallthru
      _
    // Predicated region
    $region10: #{tpu_custom_call.1} parent=1 // pred_check
      _
    $region11: #{tpu_custom_call.1} parent=1 // pred_check_branch
      %22 = sbr.rel (0) target = $region13
    $region12: #{tpu_custom_call.1} parent=1 // pred_region
      %23 = dma.done [#allocation4], 16
    $region13: #{tpu_custom_call.1} parent=1 // pred_fallthru
      _
    %p24 = scmp.eq.s32.totalorder 0, 0
    // Predicated region
    $region14: #{tpu_custom_call.1} parent=1 // pred_check
      %p25 = pneg %p24
    $region15: #{tpu_custom_call.1} parent=1 // pred_check_branch
      %27 = sbr.rel (%p25) target = $region17
    $region16: #{tpu_custom_call.1} parent=1 // pred_region
      %28 = vst [vmem:[#allocation2] sm:$0x1] 0.0
    $region17: #{tpu_custom_call.1} parent=1 // pred_fallthru
      _
    %v29 = vld [vmem:[%s1] sm:$0x1]
    %v30 = vld [vmem:[#allocation3] sm:$0x1]
    %v31 = vsub.f32 %v29, %v30
    %vm32 = vcmp.gt.f32.partialorder %v31, 0.0
    %v33 = vsel %vm32, 0.49, -0.51
    %v34 = vmul.f32 %v31, %v33
    %v35 = vld [vmem:[#allocation2] sm:$0x1]
    %v36 = vadd.f32 %v34, 0.0
    %v37 = vadd.f32 %v35, %v36
    %38 = vst [vmem:[#allocation2] sm:$0x1] %v37
    // Predicated region
    $region18: #{tpu_custom_call.1} parent=1 // pred_check
      %p39 = pneg %p24
    $region19: #{tpu_custom_call.1} parent=1 // pred_check_branch
      %41 = sbr.rel (%p39) target = $region21
    $region20: #{tpu_custom_call.1} parent=1 // pred_region
      %v42 = vld [vmem:[#allocation2] sm:$0x1]
      %vm43 = vcmask 1040384
      %v44 = vsel %vm43, %v42, 0.0
      %45 = vadd.xlane.f32.xlu0 %v44
      %v46 = vpop.xlane.xlu0 %45
      %v47 = vrot.slane %v46, 4
      %v48 = vadd.f32 %v46, %v47
      %v49 = vrot.slane %v48, 2
      %v50 = vadd.f32 %v48, %v49
      %v51 = vrot.slane %v50, 1
      %v52 = vadd.f32 %v50, %v51
      %s53 = vtos %v52
      %s54 = smul.f32 %s53, 0.25
      %s55 = scalar_lea.smem [#allocation6], 0
      %56 = sst [smem:[%s55]] %s54
    $region21: #{tpu_custom_call.1} parent=1 // pred_fallthru
      _
    // Predicated region
    $region22: #{tpu_custom_call.1} parent=1 // pred_check
      _
    $region23: #{tpu_custom_call.1} parent=1 // pred_check_branch
      %58 = sbr.rel (0) target = $region25
    $region24: #{tpu_custom_call.1} parent=1 // pred_region
      %s60 = ssub.s32 16, 16
      %61 = vsyncadd [#allocation5], %s60
      %64 = dma.smem_to_hbm [#allocation6], 16, %s2, [#allocation5]
    $region25: #{tpu_custom_call.1} parent=1 // pred_fallthru
      _
    // Predicated region
    $region26: #{tpu_custom_call.1} parent=1 // pred_check
      _
    $region27: #{tpu_custom_call.1} parent=1 // pred_check_branch
      %66 = sbr.rel (0) target = $region29
    $region28: #{tpu_custom_call.1} parent=1 // pred_region
      %67 = dma.done [#allocation5], 16
    $region29: #{tpu_custom_call.1} parent=1 // pred_fallthru
      _
    %68 = sfence
    %69 = vsyncpa [#allocation4], 1
    %70 = vsyncpa [#allocation5], 1

</llo_original>
